<compile_context>
chip_gen: v5e
topology: v5e:2x2
jax: 0.10.0
libtpu: 0.0.40
codegen_flags: <defaults>
</compile_context>

<pallas_src>
import functools

import jax
import jax.numpy as jnp
from jax import lax
from jax.experimental import pallas as pl
from jax.experimental.pallas import tpu as pltpu


_LANES = 128  # lane width of the dense 2-D view


def _inplane_loss_kernel(pred_ref, gt_ref, out_ref, acc_ref, *,
                         loss, normalize, eps, n_valid):
    c = pl.program_id(0)           # partial-sum index ("parallel" axis)
    j = pl.program_id(1)           # reduction step   ("arbitrary" axis)
    n_inner = pl.num_programs(1)

    blk_rows, lanes = pred_ref.shape
    blk_elems = blk_rows * lanes

    @pl.when(j == 0)
    def _init():
        acc_ref[...] = jnp.zeros_like(acc_ref)

    pred = pred_ref[...].astype(jnp.float32)   # (blk_rows, lanes)
    gt = gt_ref[...].astype(jnp.float32)

    need_pairs = normalize or (loss == 'geodesic')
    if need_pairs:
        lane = lax.broadcasted_iota(jnp.int32, (blk_rows, lanes), 1)
        even = (lane & 1) == 0

        def pair_other(v):
            # cos/sin pairs sit at adjacent lanes (2k, 2k+1); lanes is even so
            # pairs never straddle a row.  pltpu.roll follows jnp.roll
            # semantics (cyclic within each row).
            nxt = pltpu.roll(v, lanes - 1, axis=1)   # v[:, l+1]
            prv = pltpu.roll(v, 1, axis=1)           # v[:, l-1]
            return jnp.where(even, nxt, prv)

    if normalize:
        # F.normalize(x, dim=1): x / max(||x||, 1e-12)
        #                      == x * rsqrt(max(||x||^2, 1e-24))   (EUP rsqrt)
        p2 = pred * pred
        g2 = gt * gt
        pred = pred * lax.rsqrt(jnp.maximum(p2 + pair_other(p2), 1e-24))
        gt = gt * lax.rsqrt(jnp.maximum(g2 + pair_other(g2), 1e-24))

    if loss == 'geodesic':
        d = pred * gt
        cos_diff = jnp.clip(d + pair_other(d), -1.0 + eps, 1.0 - eps)
        # TODO(synk): relies on Mosaic lowering jnp.arccos; the geodesic kernel
        # path is not exercised on-TPU in __main__ (covered via the JAX path).
        contrib = jnp.where(even, jnp.arccos(cos_diff), 0.0)
    elif loss == 'l1':
        contrib = jnp.abs(pred - gt)
    elif loss == 'l2':
        diff = pred - gt
        contrib = diff * diff
    else:
        raise NotImplementedError(loss)

    def fold(x):
        # (blk_rows, lanes) -> (8, lanes) via row-group sums: pure VPU adds,
        # keeps the resident accumulator to a single vreg-sized tile.
        return jnp.sum(x.reshape(-1, 8, lanes), axis=0)

    block_id = c * n_inner + j
    start = block_id * blk_elems
    is_full = start + blk_elems <= n_valid

    @pl.when(is_full)
    def _steady():
        # Steady-state path: no index mask, just accumulate.
        acc_ref[...] += fold(contrib)

    @pl.when(jnp.logical_not(is_full))
    def _tail():
        # Only tail / out-of-range blocks pay for the iota + compare + select.
        row = lax.broadcasted_iota(jnp.int32, (blk_rows, lanes), 0)
        col = lax.broadcasted_iota(jnp.int32, (blk_rows, lanes), 1)
        idx = start + row * lanes + col
        acc_ref[...] += fold(jnp.where(idx < n_valid, contrib, 0.0))

    @pl.when(j == n_inner - 1)
    def _finalize():
        out_ref[0] = acc_ref[...]


def _inplane_loss_jax(pred, gt, *, loss, normalize, eps):
    """Fused pure-JAX path used for small batches (and as semantics spec)."""
    pred = pred.astype(jnp.float32)
    gt = gt.astype(jnp.float32)
    if normalize:
        pred = pred * lax.rsqrt(
            jnp.maximum(jnp.sum(pred * pred, axis=1, keepdims=True), 1e-24))
        gt = gt * lax.rsqrt(
            jnp.maximum(jnp.sum(gt * gt, axis=1, keepdims=True), 1e-24))
    if loss == 'geodesic':
        cd = jnp.clip(jnp.sum(pred * gt, axis=1), -1.0 + eps, 1.0 - eps)
        return jnp.mean(jnp.arccos(cd))
    if loss == 'l1':
        return jnp.mean(jnp.abs(pred - gt))
    if loss == 'l2':
        return jnp.mean((pred - gt) ** 2)
    raise NotImplementedError(loss)


def inplane_loss(pred_cos_sin, gt_cos_sin, *, loss='l2', normalize=False,
                 eps=1e-6, rows_per_block=2048, min_pallas_batch=8192,
                 num_partials=2):
    """Pallas equivalent of InplaneLoss(loss, normalize).forward."""
    assert pred_cos_sin.shape == gt_cos_sin.shape
    B, C = pred_cos_sin.shape
    assert C == 2

    n_valid = 2 * B
    rows = pl.cdiv(n_valid, _LANES)

    # Small-batch fast path: the fixed pallas_call launch (and a possible pad
    # copy) is slower than a handful of fused XLA ops below this size.
    if B < min_pallas_batch or rows < 8:
        return _inplane_loss_jax(pred_cos_sin, gt_cos_sin, loss=loss,
                                 normalize=normalize, eps=eps)

    if pred_cos_sin.dtype != jnp.float32:
        pred_cos_sin = pred_cos_sin.astype(jnp.float32)
        gt_cos_sin = gt_cos_sin.astype(jnp.float32)

    def to_rows(x):
        flat = x.reshape(-1)                       # zero-copy (row-major (B,2))
        padded = rows * _LANES
        if padded != n_valid:                      # copy only if 2B % 128 != 0
            flat = jnp.pad(flat, (0, padded - n_valid))
        return flat.reshape(rows, _LANES)

    pred2d = to_rows(pred_cos_sin)
    gt2d = to_rows(gt_cos_sin)

    # 1 MiB f32 per input per step at the default rows_per_block; fits the
    # v5e/v6e/v7x scoped-VMEM budgets double-buffered.
    blk_rows = min(rows_per_block, (rows // 8) * 8)
    total_blocks = pl.cdiv(rows, blk_rows)
    # v7x: one partial-sum per TensorCore via the "parallel" leading axis.
    # Costs nothing on 1-TC chips (same total number of grid steps).
    p = min(num_partials, total_blocks) if total_blocks >= 2 else 1
    n_inner = pl.cdiv(total_blocks, p)

    def in_map(c, j):
        # Clamp: (c, j) cells past the last real block re-read a valid block;
        # their contribution is masked to zero inside the kernel.
        return (jnp.minimum(c * n_inner + j, total_blocks - 1), 0)

    block_bytes = blk_rows * _LANES * 4
    kernel = functools.partial(_inplane_loss_kernel, loss=loss,
                               normalize=normalize, eps=eps, n_valid=n_valid)

    partials = pl.pallas_call(
        kernel,
        out_shape=jax.ShapeDtypeStruct((p, 8, _LANES), jnp.float32),
        grid=(p, n_inner),
        in_specs=[
            pl.BlockSpec((blk_rows, _LANES), in_map),
            pl.BlockSpec((blk_rows, _LANES), in_map),
        ],
        out_specs=pl.BlockSpec((1, 8, _LANES), lambda c, j: (c, 0, 0)),
        scratch_shapes=[pltpu.VMEM((8, _LANES), jnp.float32)],
        compiler_params=pltpu.CompilerParams(
            dimension_semantics=("parallel", "arbitrary"),
            vmem_limit_bytes=max(16 * 1024 * 1024, 8 * block_bytes)),
        cost_estimate=pl.CostEstimate(
            flops=10 * n_valid,
            transcendentals=n_valid if (normalize or loss == 'geodesic') else 0,
            bytes_accessed=2 * n_valid * 4 + p * 8 * _LANES * 4),
    )(pred2d, gt2d)

    denom = float(B) if loss == 'geodesic' else float(n_valid)
    # TODO(synk): `assert not torch.isnan(loss)` is a host-side check left to
    # the caller (no device-side assert).
    return jnp.sum(partials) / denom


def _reference(pred, gt, *, loss, normalize, eps=1e-6):
    pred = pred.astype(jnp.float32)
    gt = gt.astype(jnp.float32)
    if normalize:
        pred = pred / jnp.maximum(jnp.linalg.norm(pred, axis=1, keepdims=True), 1e-12)
        gt = gt / jnp.maximum(jnp.linalg.norm(gt, axis=1, keepdims=True), 1e-12)
    if loss == 'geodesic':
        cd = jnp.clip(jnp.sum(pred * gt, axis=1), -1.0 + eps, 1.0 - eps)
        return jnp.mean(jnp.arccos(cd))
    if loss == 'l1':
        return jnp.mean(jnp.abs(pred - gt))
    return jnp.mean((pred - gt) ** 2)


if __name__ == "__main__":
    def run_case(B, loss_mode, norm, **kw):
        kp, kg = jax.random.split(jax.random.fold_in(jax.random.PRNGKey(0), B))
        pred = jax.random.normal(kp, (B, 2), dtype=jnp.float32)
        gt = jax.random.normal(kg, (B, 2), dtype=jnp.float32)
        out = inplane_loss(pred, gt, loss=loss_mode, normalize=norm, **kw)
        out = jax.block_until_ready(out)
        ref = _reference(pred, gt, loss=loss_mode, normalize=norm)
        if bool(jnp.isnan(out)):
            return False
        return bool(jnp.allclose(out, ref, rtol=1e-4, atol=1e-6))

    results = []

    # Module-consistent small shape (B=8): small-batch fast path (pure JAX).
    for loss_mode, norm in [('l2', False), ('l2', True), ('l1', False),
                            ('l1', True), ('geodesic', False),
                            ('geodesic', True)]:
        results.append(run_case(8, loss_mode, norm))

    # Pallas kernel path (small-but-kernel-sized batches).
    # B=777: pad + tail-mask path, lane-pairing for the normalize branch.
    for loss_mode, norm in [('l2', False), ('l2', True), ('l1', False),
                            ('l1', True)]:
        results.append(run_case(777, loss_mode, norm, min_pallas_batch=512))
    # B=4096 (multiple of 64): fully zero-copy wrapper path, single block.
    results.append(run_case(4096, 'l2', False, min_pallas_batch=512))
    # Multi-step accumulation + dual partial-sum outputs (small blocks so a
    # small batch still produces several grid steps per partial).
    results.append(run_case(40000, 'l2', False, min_pallas_batch=512,
                            rows_per_block=64))
    # TODO(synk): the geodesic kernel path (jnp.arccos lowering) is implemented
    # but exercised here only via the small-batch JAX path.

    if all(results):
        print("KERNEL_OK")
</pallas_src>

<mosaic_0001>
module attributes {stable_mosaic.version = 11 : i64} {
  func.func @_inplane_loss_kernel(%arg0: i32, %arg1: i32, %arg2: memref<8x128xf32, #tpu.memory_space<vmem>>, %arg3: memref<8x128xf32, #tpu.memory_space<vmem>>, %arg4: memref<1x8x128xf32, #tpu.memory_space<vmem>>, %arg5: memref<8x128xf32, #tpu.memory_space<vmem>>) attributes {dimension_semantics = [#tpu.dimension_semantics<parallel>, #tpu.dimension_semantics<arbitrary>], iteration_bounds = array<i64: 2, 1>, scalar_prefetch = 0 : i64, scratch_operands = 1 : i64, tpu.core_type = #tpu.core_type<tc>, window_params = [{transform_indices = @transform_0, window_bounds = array<i64: 8, 128>}, {transform_indices = @transform_1, window_bounds = array<i64: 8, 128>}, {transform_indices = @transform_2, window_bounds = array<i64: 1, 8, 128>}]} {
    %c0_i32 = arith.constant 0 : i32
    %0 = arith.cmpi eq, %arg1, %c0_i32 : i32
    %1 = arith.extui %0 : i1 to i32
    %c0_i32_0 = arith.constant 0 : i32
    %2 = arith.cmpi ne, %1, %c0_i32_0 : i32
    scf.if %2 {
      %cst = arith.constant 0.000000e+00 : f32
      %20 = vector.broadcast %cst : f32 to vector<8x128xf32>
      %c0_9 = arith.constant 0 : index
      %c0_10 = arith.constant 0 : index
      %21 = vector.load %arg5[%c0_9, %c0_10] : memref<8x128xf32, #tpu.memory_space<vmem>>, vector<8x128xf32>
      tpu.vector_store %arg5[%c0_9, %c0_10], %20 {strides = array<i32>} : memref<8x128xf32, #tpu.memory_space<vmem>>, vector<8x128xf32>,
    } else {
    }
    %c0 = arith.constant 0 : index
    %c0_1 = arith.constant 0 : index
    %3 = vector.load %arg2[%c0, %c0_1] : memref<8x128xf32, #tpu.memory_space<vmem>>, vector<8x128xf32>
    %c0_2 = arith.constant 0 : index
    %c0_3 = arith.constant 0 : index
    %4 = vector.load %arg3[%c0_2, %c0_3] : memref<8x128xf32, #tpu.memory_space<vmem>>, vector<8x128xf32>
    %5 = arith.subf %3, %4 : vector<8x128xf32>
    %6 = arith.mulf %5, %5 : vector<8x128xf32>
    %c1_i32 = arith.constant 1 : i32
    %7 = arith.muli %arg0, %c1_i32 : i32
    %8 = arith.addi %7, %arg1 : i32
    %c1024_i32 = arith.constant 1024 : i32
    %9 = arith.muli %8, %c1024_i32 : i32
    %c1024_i32_4 = arith.constant 1024 : i32
    %10 = arith.addi %9, %c1024_i32_4 : i32
    %c1554_i32 = arith.constant 1554 : i32
    %11 = arith.cmpi sle, %10, %c1554_i32 : i32
    %12 = arith.extui %11 : i1 to i32
    %c0_i32_5 = arith.constant 0 : i32
    %13 = arith.cmpi ne, %12, %c0_i32_5 : i32
    scf.if %13 {
      %c0_9 = arith.constant 0 : index
      %c0_10 = arith.constant 0 : index
      %20 = vector.load %arg5[%c0_9, %c0_10] : memref<8x128xf32, #tpu.memory_space<vmem>>, vector<8x128xf32>
      %21 = vector.shape_cast %6 : vector<8x128xf32> to vector<1x8x128xf32>
      %cst = arith.constant dense<0.000000e+00> : vector<8x128xf32>
      %22 = vector.multi_reduction <add>, %21, %cst [0] : vector<1x8x128xf32> to vector<8x128xf32>
      %23 = arith.addf %20, %22 : vector<8x128xf32>
      %c0_11 = arith.constant 0 : index
      %c0_12 = arith.constant 0 : index
      %24 = vector.load %arg5[%c0_11, %c0_12] : memref<8x128xf32, #tpu.memory_space<vmem>>, vector<8x128xf32>
      tpu.vector_store %arg5[%c0_11, %c0_12], %23 {strides = array<i32>} : memref<8x128xf32, #tpu.memory_space<vmem>>, vector<8x128xf32>,
    } else {
    }
    %true = arith.constant true
    %14 = arith.xori %11, %true : i1
    %15 = arith.extui %14 : i1 to i32
    %c0_i32_6 = arith.constant 0 : i32
    %16 = arith.cmpi ne, %15, %c0_i32_6 : i32
    scf.if %16 {
      %20 = tpu.iota {dimensions = array<i32: 0>} : vector<8x128xi32>
      %21 = tpu.iota {dimensions = array<i32: 1>} : vector<8x128xi32>
      %c128_i32 = arith.constant 128 : i32
      %22 = vector.broadcast %c128_i32 : i32 to vector<8x128xi32>
      %23 = arith.muli %20, %22 : vector<8x128xi32>
      %24 = vector.broadcast %9 : i32 to vector<8x128xi32>
      %25 = arith.addi %24, %23 : vector<8x128xi32>
      %26 = arith.addi %25, %21 : vector<8x128xi32>
      %c0_9 = arith.constant 0 : index
      %c0_10 = arith.constant 0 : index
      %27 = vector.load %arg5[%c0_9, %c0_10] : memref<8x128xf32, #tpu.memory_space<vmem>>, vector<8x128xf32>
      %c1554_i32_11 = arith.constant 1554 : i32
      %28 = vector.broadcast %c1554_i32_11 : i32 to vector<8x128xi32>
      %29 = arith.cmpi slt, %26, %28 : vector<8x128xi32>
      %cst = arith.constant 0.000000e+00 : f32
      %30 = vector.broadcast %cst : f32 to vector<8x128xf32>
      %31 = arith.select %29, %6, %30 : vector<8x128xi1>, vector<8x128xf32>
      %32 = vector.shape_cast %31 : vector<8x128xf32> to vector<1x8x128xf32>
      %cst_12 = arith.constant dense<0.000000e+00> : vector<8x128xf32>
      %33 = vector.multi_reduction <add>, %32, %cst_12 [0] : vector<1x8x128xf32> to vector<8x128xf32>
      %34 = arith.addf %27, %33 : vector<8x128xf32>
      %c0_13 = arith.constant 0 : index
      %c0_14 = arith.constant 0 : index
      %35 = vector.load %arg5[%c0_13, %c0_14] : memref<8x128xf32, #tpu.memory_space<vmem>>, vector<8x128xf32>
      tpu.vector_store %arg5[%c0_13, %c0_14], %34 {strides = array<i32>} : memref<8x128xf32, #tpu.memory_space<vmem>>, vector<8x128xf32>,
    } else {
    }
    %c0_i32_7 = arith.constant 0 : i32
    %17 = arith.cmpi eq, %arg1, %c0_i32_7 : i32
    %18 = arith.extui %17 : i1 to i32
    %c0_i32_8 = arith.constant 0 : i32
    %19 = arith.cmpi ne, %18, %c0_i32_8 : i32
    scf.if %19 {
      %c0_9 = arith.constant 0 : index
      %c0_10 = arith.constant 0 : index
      %20 = vector.load %arg5[%c0_9, %c0_10] : memref<8x128xf32, #tpu.memory_space<vmem>>, vector<8x128xf32>
      %c0_11 = arith.constant 0 : index
      %c0_12 = arith.constant 0 : index
      %c0_13 = arith.constant 0 : index
      %21 = vector.load %arg4[%c0_11, %c0_12, %c0_13] : memref<1x8x128xf32, #tpu.memory_space<vmem>>, vector<1x8x128xf32>
      %22 = vector.shape_cast %21 : vector<1x8x128xf32> to vector<8x128xf32>
      %23 = vector.shape_cast %20 : vector<8x128xf32> to vector<1x8x128xf32>
      tpu.vector_store %arg4[%c0_11, %c0_12, %c0_13], %23 {strides = array<i32>} : memref<1x8x128xf32, #tpu.memory_space<vmem>>, vector<1x8x128xf32>,
    } else {
    }
    return
  }
  func.func @transform_0(%arg0: i32, %arg1: i32) -> (i32, i32) {
    %c1_i32 = arith.constant 1 : i32
    %0 = arith.muli %arg0, %c1_i32 : i32
    %1 = arith.addi %0, %arg1 : i32
    %c1_i32_0 = arith.constant 1 : i32
    %2 = arith.minsi %1, %c1_i32_0 : i32
    %c0_i32 = arith.constant 0 : i32
    %c0_i32_1 = arith.constant 0 : i32
    return %2, %c0_i32 : i32, i32
  }
  func.func @transform_1(%arg0: i32, %arg1: i32) -> (i32, i32) {
    %c1_i32 = arith.constant 1 : i32
    %0 = arith.muli %arg0, %c1_i32 : i32
    %1 = arith.addi %0, %arg1 : i32
    %c1_i32_0 = arith.constant 1 : i32
    %2 = arith.minsi %1, %c1_i32_0 : i32
    %c0_i32 = arith.constant 0 : i32
    %c0_i32_1 = arith.constant 0 : i32
    return %2, %c0_i32 : i32, i32
  }
  func.func @transform_2(%arg0: i32, %arg1: i32) -> (i32, i32, i32) {
    %c0_i32 = arith.constant 0 : i32
    %c0_i32_0 = arith.constant 0 : i32
    %c0_i32_1 = arith.constant 0 : i32
    return %arg0, %c0_i32, %c0_i32_0 : i32, i32, i32
  }
}

</mosaic_0001>

<llo_original>
// kernel: tpu_custom_call.1
$region0: #{tpu_custom_call.1}
  #allocation0 [shape = 'u32[]', space=smem, size = 0x4, offset = 0x4, fixed_abs, tag = 'smem constant byte address 0x4 - core index']
  #allocation1 [shape = 'u32[72,128]{1,0:T(1,128)}', space=vmem, size = 0x9000, scoped, tag = 'internal scratch']
  #allocation2 [shape = 'f32[8,128]{1,0:T(8,128)}', space=vmem, size = 0x1000, scoped, tag = 'scratch operand']
  %s0 = inlined_call_operand.hbm [shape: f32[13,128], index: 0, kind: input, shape index: {}]
  %s1 = inlined_call_operand.hbm [shape: f32[13,128], index: 1, kind: input, shape index: {}]
  %s2 = inlined_call_operand.hbm [shape: f32[2,8,128], index: 2, kind: output, shape index: {}]
  %s3 = sld [smem:[#allocation0]]
  $region65: #{tpu_custom_call.1} parent=0
    _
  %s5 = ssub.s32 1, %s3
  %s6 = scalar_select 0, %s5, %s3
  $region1: #{tpu_custom_call.1} parent=0
    #allocation3 [shape = 'u8[8192]{0}', space=vmem, size = 0x2000, scoped, tag = 'input window, operand 0']
    #allocation4 [shape = 's32[2]{0}', space=sflag, size = 0x8, scoped, tag = 'scoped memory for tpu_custom_call.1']
    #allocation5 [shape = 's32[2]{0}', space=sflag, size = 0x8, scoped, tag = 'scoped memory for tpu_custom_call.1']
    #allocation6 [shape = 'u8[8192]{0}', space=vmem, size = 0x2000, scoped, tag = 'input window, operand 1']
    #allocation7 [shape = 's32[2]{0}', space=sflag, size = 0x8, scoped, tag = 'scoped memory for tpu_custom_call.1']
    #allocation8 [shape = 'u8[8192]{0}', space=vmem, size = 0x2000, scoped, tag = 'output window, operand 0']
    %7 = vsyncpa [#allocation4], 0
    %s8 = scalar_lea.sflag [#allocation4], 1
    %9 = vsyncpa %s8, 0
    %10 = vsyncpa [#allocation7], 0
    %s11 = scalar_lea.sflag [#allocation7], 1
    %12 = vsyncpa %s11, 0
    %13 = vsyncpa [#allocation5], 0
    %s14 = scalar_lea.sflag [#allocation5], 1
    %15 = vsyncpa %s14, 0
    loop: start=0, step=1, limit=4
    $region2: #{tpu_custom_call.1} parent=1 // loop_pre_header
      _
    $region3: #{tpu_custom_call.1} parent=1 // loop_header
      %s17 = sphi 0, %s21
      %p18 = scmp.ge.s32.totalorder %s17, 4
      %s24 = sphi 0, %s36
      %s25 = sphi 0, %s32
      %s26 = sphi 0, %s24
      %s27 = sphi 0, %s25
      %s28 = sphi 0, %s26
      %s29 = sphi 0, %s27
      %s45 = sphi 0, %s47
      %s48 = sphi 0, %s45
      %s49 = sphi 0, %s48
      %s65 = sphi 0, %s49
      %s77 = sphi 0, %s79
      %s80 = sphi 0, %s77
      %s81 = sphi 0, %s80
      %s97 = sphi 0, %s81
      %s103 = sphi 0, %s105
      %s106 = sphi 0, %s103
      %s107 = sphi 0, %s106
      %s123 = sphi 0, %s107
    $region4: #{tpu_custom_call.1} parent=1 // loop_header_branch
      %20 = sbr.rel (%p18) target = $region8
    $region5: #{tpu_custom_call.1} parent=1 // loop_body
      %s22 = ssub.s32 %s17, 1
      %s23 = ssub.s32 %s17, 2
      %s30 = sadd.s32 1, %s25
      %p31 = scmp.ge.s32.totalorder %s30, 1
      %s32 = scalar_select %p31, 0, %s30
      %s33 = sadd.s32 1, %s24
      %s34 = scalar_select %p31, %s33, %s24
      %p35 = scmp.ge.s32.totalorder %s34, 2
      %s36 = scalar_select %p35, 0, %s34
      %s37 = sadd.s32 %s24, %s25
      %p38 = scmp.lt.s32.totalorder %s37, 1
      %s39 = scalar_select %p38, %s37, 1
      %s40 = sadd.s32 %s36, %s32
      %p41 = scmp.lt.s32.totalorder %s40, 1
      %s42 = scalar_select %p41, %s40, 1
      %s43 = ssub.s32 %s39, %s42
      %p44 = scmp.eq.s32.totalorder %s43, 0
      %s46 = sadd.s32 %s45, 1
      %s47 = scalar_select %p44, %s45, %s46
      %p50 = pneg %p44
      %p51 = scmp.eq.s32.totalorder %s17, 1
      %p52 = por %p50, %p51
      %p53 = scmp.ne.s32.totalorder %s45, %s48
      %p54 = scmp.eq.s32.totalorder %s17, 0
      %p55 = por %p53, %p54
      %p56 = scmp.ne.s32.totalorder %s45, %s48
      %p57 = scmp.eq.s32.totalorder %s22, 1
      %p58 = por %p56, %p57
      %p59 = scmp.ne.s32.totalorder %s48, %s49
      %p60 = scmp.eq.s32.totalorder %s22, 0
      %p61 = por %p59, %p60
      %p62 = scmp.ne.s32.totalorder %s48, %s49
      %p63 = scmp.eq.s32.totalorder %s23, 1
      %p64 = por %p62, %p63
      %p66 = scmp.ne.s32.totalorder %s49, %s65
      %p67 = scmp.eq.s32.totalorder %s23, 0
      %p68 = por %p66, %p67
      %s69 = sadd.s32 %s24, %s25
      %p70 = scmp.lt.s32.totalorder %s69, 1
      %s71 = scalar_select %p70, %s69, 1
      %s72 = sadd.s32 %s36, %s32
      %p73 = scmp.lt.s32.totalorder %s72, 1
      %s74 = scalar_select %p73, %s72, 1
      %s75 = ssub.s32 %s71, %s74
      %p76 = scmp.eq.s32.totalorder %s75, 0
      %s78 = sadd.s32 %s77, 1
      %s79 = scalar_select %p76, %s77, %s78
      %p82 = pneg %p76
      %p83 = scmp.eq.s32.totalorder %s17, 1
      %p84 = por %p82, %p83
      %p85 = scmp.ne.s32.totalorder %s77, %s80
      %p86 = scmp.eq.s32.totalorder %s17, 0
      %p87 = por %p85, %p86
      %p88 = scmp.ne.s32.totalorder %s77, %s80
      %p89 = scmp.eq.s32.totalorder %s22, 1
      %p90 = por %p88, %p89
      %p91 = scmp.ne.s32.totalorder %s80, %s81
      %p92 = scmp.eq.s32.totalorder %s22, 0
      %p93 = por %p91, %p92
      %p94 = scmp.ne.s32.totalorder %s80, %s81
      %p95 = scmp.eq.s32.totalorder %s23, 1
      %p96 = por %p94, %p95
      %p98 = scmp.ne.s32.totalorder %s81, %s97
      %p99 = scmp.eq.s32.totalorder %s23, 0
      %p100 = por %p98, %p99
      %s101 = ssub.s32 %s24, %s36
      %p102 = scmp.eq.s32.totalorder %s101, 0
      %s104 = sadd.s32 %s103, 1
      %s105 = scalar_select %p102, %s103, %s104
      %p108 = pneg %p102
      %p109 = scmp.eq.s32.totalorder %s17, 1
      %p110 = por %p108, %p109
      %p111 = scmp.ne.s32.totalorder %s103, %s106
      %p112 = scmp.eq.s32.totalorder %s17, 0
      %p113 = por %p111, %p112
      %p114 = scmp.ne.s32.totalorder %s103, %s106
      %p115 = scmp.eq.s32.totalorder %s22, 1
      %p116 = por %p114, %p115
      %p117 = scmp.ne.s32.totalorder %s106, %s107
      %p118 = scmp.eq.s32.totalorder %s22, 0
      %p119 = por %p117, %p118
      %p120 = scmp.ne.s32.totalorder %s106, %s107
      %p121 = scmp.eq.s32.totalorder %s23, 1
      %p122 = por %p120, %p121
      %p124 = scmp.ne.s32.totalorder %s107, %s123
      %p125 = scmp.eq.s32.totalorder %s23, 0
      %p126 = por %p124, %p125
      %p127 = scmp.le.s32.totalorder 1, %s17
      %p128 = scmp.lt.s32.totalorder %s17, 3
      %p129 = pnand %p127, %p128
      %p130 = pneg %p129
      // Predicated region
      $region9: #{tpu_custom_call.1} parent=5 // pred_check
        _
      $region10: #{tpu_custom_call.1} parent=5 // pred_check_branch
        %132 = sbr.rel (%p129) target = $region12
      $region11: #{tpu_custom_call.1} parent=5 // pred_region
        %s133 = ssub.s32 %s17, 1
      $region12: #{tpu_custom_call.1} parent=5 // pred_fallthru
        _
      %p134 = scmp.lt.s32.totalorder %s17, 2
      // Predicated region
      $region13: #{tpu_custom_call.1} parent=5 // pred_check
        %p135 = pneg %p134
      $region14: #{tpu_custom_call.1} parent=5 // pred_check_branch
        %137 = sbr.rel (%p135) target = $region16
      $region15: #{tpu_custom_call.1} parent=5 // pred_region
        // Predicated region
        $region17: #{tpu_custom_call.1} parent=15 // pred_check
          %p138 = pneg %p55
        $region18: #{tpu_custom_call.1} parent=15 // pred_check_branch
          %140 = sbr.rel (%p138) target = $region20
        $region19: #{tpu_custom_call.1} parent=15 // pred_region
          %s141 = sand.u32 %s45, 1
          %s142 = scalar_lea.sflag [#allocation4], %s141
          %s143 = sand.u32 %s45, 1
          %s144 = smul.addr %s143, 8
          %s145 = scalar_lea.vmem [#allocation3], %s144
          %s146 = sadd.s32 %s24, %s25
          %p147 = scmp.lt.s32.totalorder %s146, 1
          %s148 = scalar_select %p147, %s146, 1
          %150 = vsyncadd %s142, 0
          %s151 = smul.addr %s148, 8
          %s152 = scalar_lea.hbm %s0, %s151
          %s154 = sshll.u32 %s152, 4
          %s155 = int_to_ptr.hbm [resolvable:$true] %s154
          %s156 = sshll.u32 %s145, 4
          %s157 = int_to_ptr.vmem [resolvable:$true] %s156
          %159 = dma.hbm_to_vmem [thread:$0]  %s155, 128, %s157, %s142
        $region20: #{tpu_custom_call.1} parent=15 // pred_fallthru
          _
        // Predicated region
        $region21: #{tpu_custom_call.1} parent=15 // pred_check
          %p160 = pneg %p87
        $region22: #{tpu_custom_call.1} parent=15 // pred_check_branch
          %162 = sbr.rel (%p160) target = $region24
        $region23: #{tpu_custom_call.1} parent=15 // pred_region
          %s163 = sand.u32 %s77, 1
          %s164 = scalar_lea.sflag [#allocation7], %s163
          %s165 = sand.u32 %s77, 1
          %s166 = smul.addr %s165, 8
          %s167 = scalar_lea.vmem [#allocation6], %s166
          %s168 = sadd.s32 %s24, %s25
          %p169 = scmp.lt.s32.totalorder %s168, 1
          %s170 = scalar_select %p169, %s168, 1
          %172 = vsyncadd %s164, 0
          %s173 = smul.addr %s170, 8
          %s174 = scalar_lea.hbm %s1, %s173
          %s176 = sshll.u32 %s174, 4
          %s177 = int_to_ptr.hbm [resolvable:$true] %s176
          %s178 = sshll.u32 %s167, 4
          %s179 = int_to_ptr.vmem [resolvable:$true] %s178
          %181 = dma.hbm_to_vmem [thread:$0]  %s177, 128, %s179, %s164
        $region24: #{tpu_custom_call.1} parent=15 // pred_fallthru
          _
      $region16: #{tpu_custom_call.1} parent=5 // pred_fallthru
        _
      %p182 = scmp.le.s32.totalorder 1, %s17
      %p183 = scmp.lt.s32.totalorder %s17, 3
      %p184 = pnand %p182, %p183
      %p185 = pneg %p184
      // Predicated region
      $region25: #{tpu_custom_call.1} parent=5 // pred_check
        _
      $region26: #{tpu_custom_call.1} parent=5 // pred_check_branch
        %187 = sbr.rel (%p184) target = $region28
      $region27: #{tpu_custom_call.1} parent=5 // pred_region
        %s188 = ssub.s32 %s17, 1
        %s189 = sand.u32 %s48, 1
        %s190 = scalar_lea.sflag [#allocation4], %s189
        %s191 = sand.u32 %s48, 1
        %s192 = smul.addr %s191, 8
        %s193 = scalar_lea.vmem [#allocation3], %s192
        // Predicated region
        $region29: #{tpu_custom_call.1} parent=27 // pred_check
          %p194 = pneg %p61
        $region30: #{tpu_custom_call.1} parent=27 // pred_check_branch
          %196 = sbr.rel (%p194) target = $region32
        $region31: #{tpu_custom_call.1} parent=27 // pred_region
          %198 = dma.done %s190, 128
        $region32: #{tpu_custom_call.1} parent=27 // pred_fallthru
          _
        %s199 = sand.u32 %s80, 1
        %s200 = scalar_lea.sflag [#allocation7], %s199
        %s201 = sand.u32 %s80, 1
        %s202 = smul.addr %s201, 8
        %s203 = scalar_lea.vmem [#allocation6], %s202
        // Predicated region
        $region33: #{tpu_custom_call.1} parent=27 // pred_check
          %p204 = pneg %p93
        $region34: #{tpu_custom_call.1} parent=27 // pred_check_branch
          %206 = sbr.rel (%p204) target = $region36
        $region35: #{tpu_custom_call.1} parent=27 // pred_region
          %208 = dma.done %s200, 128
        $region36: #{tpu_custom_call.1} parent=27 // pred_fallthru
          _
        %s209 = sand.u32 %s48, 1
        %s210 = scalar_lea.sflag [#allocation4], %s209
        %s211 = sand.u32 %s48, 1
        %s212 = smul.addr %s211, 8
        %s213 = scalar_lea.vmem [#allocation3], %s212
        %p214 = pneg %p61
        %p215 = pneg %p58
        %s216 = sand.u32 %s80, 1
        %s217 = scalar_lea.sflag [#allocation7], %s216
        %s218 = sand.u32 %s80, 1
        %s219 = smul.addr %s218, 8
        %s220 = scalar_lea.vmem [#allocation6], %s219
        %p221 = pneg %p93
        %p222 = pneg %p90
        %p223 = pneg %p119
        %p224 = pneg %p116
        %s225 = sand.u32 %s106, 1
        %s226 = scalar_lea.sflag [#allocation5], %s225
        %s227 = sand.u32 %s106, 1
        %s228 = smul.addr %s227, 8
        %s229 = scalar_lea.vmem [#allocation8], %s228
        %s230 = sadd.s32 %s26, %s27
        %p231 = scmp.lt.s32.totalorder %s230, 1
        %s232 = scalar_select %p231, %s230, 1
        %s233 = sadd.s32 %s26, %s27
        %p234 = scmp.lt.s32.totalorder %s233, 1
        %s235 = scalar_select %p234, %s233, 1
        %p236 = scmp.eq.s32.totalorder %s27, 0
        // Predicated region
        $region37: #{tpu_custom_call.1} parent=27 // pred_check
          %p237 = pneg %p236
        $region38: #{tpu_custom_call.1} parent=27 // pred_check_branch
          %239 = sbr.rel (%p237) target = $region40
        $region39: #{tpu_custom_call.1} parent=27 // pred_region
          %240 = vst [vmem:[#allocation2] sm:$0xff] 0.0
        $region40: #{tpu_custom_call.1} parent=27 // pred_fallthru
          _
        %v241 = vld [vmem:[%s193] sm:$0xff]
        %v242 = vld [vmem:[%s203] sm:$0xff]
        %v243 = vsub.f32 %v241, %v242
        %v244 = vmul.f32 %v243, %v243
        %s245 = sadd.s32 %s26, %s27
        %s246 = smul.u32 %s245, 1024
        %s247 = sadd.s32 %s246, 1024
        %p248 = scmp.le.s32.totalorder %s247, 1554
        // Predicated region
        $region41: #{tpu_custom_call.1} parent=27 // pred_check
          %p249 = pneg %p248
        $region42: #{tpu_custom_call.1} parent=27 // pred_check_branch
          %251 = sbr.rel (%p249) target = $region44
        $region43: #{tpu_custom_call.1} parent=27 // pred_region
          %v252 = vld [vmem:[#allocation2] sm:$0xff]
          %v253 = vadd.f32 %v244, 0.0
          %v254 = vadd.f32 %v252, %v253
          %255 = vst [vmem:[#allocation2] sm:$0xff] %v254
        $region44: #{tpu_custom_call.1} parent=27 // pred_fallthru
          _
        %p256 = scmp.gt.s32.totalorder %s247, 1554
        // Predicated region
        $region45: #{tpu_custom_call.1} parent=27 // pred_check
          %p257 = pneg %p256
        $region46: #{tpu_custom_call.1} parent=27 // pred_check_branch
          %259 = sbr.rel (%p257) target = $region48
        $region47: #{tpu_custom_call.1} parent=27 // pred_region
          %v260 = vlaneseq
          %v261 = vshrl.u32 %v260, 7
          %v262 = vlaneseq
          %v263 = vand.u32 %v262, 127
          %v264 = vmul.u32 %v261, 128
          %v265 = vstv %s246
          %v266 = vadd.s32 %v265, %v264
          %v267 = vadd.s32 %v266, %v263
          %v268 = vld [vmem:[#allocation2] sm:$0xff]
          %vm269 = vcmp.lt.s32.totalorder %v267, 1554
          %v270 = vsel %vm269, %v244, 0.0
          %v271 = vadd.f32 %v270, 0.0
          %v272 = vadd.f32 %v268, %v271
          %273 = vst [vmem:[#allocation2] sm:$0xff] %v272
        $region48: #{tpu_custom_call.1} parent=27 // pred_fallthru
          _
        // Predicated region
        $region49: #{tpu_custom_call.1} parent=27 // pred_check
          %p274 = pneg %p236
        $region50: #{tpu_custom_call.1} parent=27 // pred_check_branch
          %276 = sbr.rel (%p274) target = $region52
        $region51: #{tpu_custom_call.1} parent=27 // pred_region
          %v277 = vld [vmem:[#allocation2] sm:$0xff]
          %278 = vst [vmem:[%s229] sm:$0xff] %v277
        $region52: #{tpu_custom_call.1} parent=27 // pred_fallthru
          _
        %s279 = sand.u32 %s106, 1
        %s280 = scalar_lea.sflag [#allocation5], %s279
        %s281 = sand.u32 %s106, 1
        %s282 = smul.addr %s281, 8
        %s283 = scalar_lea.vmem [#allocation8], %s282
        // Predicated region
        $region53: #{tpu_custom_call.1} parent=27 // pred_check
          %p284 = pneg %p116
        $region54: #{tpu_custom_call.1} parent=27 // pred_check_branch
          %286 = sbr.rel (%p284) target = $region56
        $region55: #{tpu_custom_call.1} parent=27 // pred_region
          %288 = vsyncadd %s280, 0
          %s289 = smul.addr %s26, 8
          %s290 = scalar_lea.hbm %s2, %s289
          %s292 = sshll.u32 %s283, 4
          %s293 = int_to_ptr.vmem [resolvable:$true] %s292
          %s294 = sshll.u32 %s290, 4
          %s295 = int_to_ptr.hbm [resolvable:$true] %s294
          %297 = dma.vmem_to_hbm [thread:$0]  %s293, 128, %s295, %s280
        $region56: #{tpu_custom_call.1} parent=27 // pred_fallthru
          _
      $region28: #{tpu_custom_call.1} parent=5 // pred_fallthru
        _
      %p298 = scmp.le.s32.totalorder 2, %s17
      // Predicated region
      $region57: #{tpu_custom_call.1} parent=5 // pred_check
        %p299 = pneg %p298
      $region58: #{tpu_custom_call.1} parent=5 // pred_check_branch
        %301 = sbr.rel (%p299) target = $region60
      $region59: #{tpu_custom_call.1} parent=5 // pred_region
        %s302 = ssub.s32 %s17, 2
        // Predicated region
        $region61: #{tpu_custom_call.1} parent=59 // pred_check
          %p303 = pneg %p122
        $region62: #{tpu_custom_call.1} parent=59 // pred_check_branch
          %305 = sbr.rel (%p303) target = $region64
        $region63: #{tpu_custom_call.1} parent=59 // pred_region
          %s306 = sand.u32 %s107, 1
          %s307 = scalar_lea.sflag [#allocation5], %s306
          %s308 = sand.u32 %s107, 1
          %s309 = smul.addr %s308, 8
          %s310 = scalar_lea.vmem [#allocation8], %s309
          %312 = dma.done %s307, 128
        $region64: #{tpu_custom_call.1} parent=59 // pred_fallthru
          _
      $region60: #{tpu_custom_call.1} parent=5 // pred_fallthru
        _
    $region6: #{tpu_custom_call.1} parent=1 // loop_footer
      %s21 = sadd.s32 1, %s17
    $region7: #{tpu_custom_call.1} parent=1 // loop_footer_branch
      %16 = sbr.rel target = $region3
    $region8: #{tpu_custom_call.1} parent=1 // loop_exit
      _
    %313 = vsyncpa [#allocation4], 1
    %s314 = scalar_lea.sflag [#allocation4], 1
    %315 = vsyncpa %s314, 1
    %316 = vsyncpa [#allocation7], 1
    %s317 = scalar_lea.sflag [#allocation7], 1
    %318 = vsyncpa %s317, 1
    %319 = vsyncpa [#allocation5], 1
    %s320 = scalar_lea.sflag [#allocation5], 1
    %321 = vsyncpa %s320, 1

</llo_original>
